<compile_context>
chip_gen: v5e
topology: v5e:2x2
jax: 0.10.0
libtpu: 0.0.40
codegen_flags: <defaults>
</compile_context>

<pallas_src>
import jax
import jax.numpy as jnp
from jax.experimental import pallas as pl
from jax.experimental.pallas import tpu as pltpu


def _round_up(n, m):
    return ((n + m - 1) // m) * m


def _mlp_kernel(x_ref, w1_ref, b1_ref, w2_ref, b2_ref, o_ref):
    B, K = x_ref.shape
    Hp = w1_ref.shape[1]          # lane-padded hidden width (multiple of 128)
    O = o_ref.shape[1]            # real (unpadded) output width

    # ---- Layer 1: Linear + ReLU -------------------------------------------
    if K <= 8:
        # Tiny contraction dim (K == 2): do it on the VPU as broadcast FMAs,
        # accumulator initialized by the lane-padded bias.  Keeps the MXU free
        # for layer 2 (the binding unit).
        h = jnp.broadcast_to(b1_ref[...], (B, Hp))
        for k in range(K):                      # static unroll
            h = h + x_ref[:, k:k + 1] * w1_ref[k:k + 1, :]
    else:
        h = jnp.dot(x_ref[...], w1_ref[...],
                    preferred_element_type=jnp.float32) + b1_ref[...]
    h = jnp.maximum(h, 0.0)

    # ---- Layer 2: Linear (MXU, 128-wide padded hidden) --------------------
    # w2_ref may be bf16 (see prepare_params); cast h to match so the MXU runs
    # in its native bf16 mode, accumulate in f32 either way.
    o = jnp.dot(h.astype(w2_ref.dtype), w2_ref[...],
                preferred_element_type=jnp.float32)

    # Store only the real output lanes (out array is [B, O], O == 4).  The few
    # masked stores are negligible next to the saved output DMA bytes.
    o_ref[...] = (o[:, :O] + b2_ref[...]).astype(o_ref.dtype)


def prepare_params(w1, b1, w2, b2, *, use_bf16_matmul=False):
    """One-time parameter preparation (hoisted out of the per-call wrapper).

    w1: [in_dim, hidden], b1: [1, hidden], w2: [hidden, out_dim], b2: [1, out_dim]
    (weights are [in, out], i.e. transposed vs PyTorch nn.Linear's [out, in]).

    Pads the hidden dim (and w2's contraction rows) to a lane multiple of 128
    so all in-kernel math is full-vreg; padded lanes are zero so ReLU(0)=0 and
    zero w2 rows contribute nothing.  Output dim is left unpadded.
    """
    K, H = w1.shape
    O = w2.shape[1]
    Hp = _round_up(H, 128)

    w1p = jnp.zeros((K, Hp), jnp.float32).at[:, :H].set(w1.astype(jnp.float32))
    b1p = jnp.zeros((1, Hp), jnp.float32).at[:, :H].set(
        b1.reshape(1, H).astype(jnp.float32))
    w2_dtype = jnp.bfloat16 if use_bf16_matmul else jnp.float32
    w2p = jnp.zeros((Hp, O), jnp.float32).at[:H, :].set(
        w2.astype(jnp.float32)).astype(w2_dtype)
    # Pad w2's output columns to 128 only for full-vreg matmul efficiency; the
    # kernel slices the real O lanes at the final store.
    Op = _round_up(O, 128)
    w2p_full = jnp.zeros((Hp, Op), w2_dtype).at[:, :O].set(w2p)
    b2r = b2.reshape(1, O).astype(jnp.float32)
    return (w1p, b1p, w2p_full, b2r)


def network_forward(x, params, *, block_batch=2048):
    """x: [B, in_dim] float32; params from prepare_params() -> [B, out_dim] f32."""
    w1p, b1p, w2p, b2 = params
    B, K = x.shape
    Hp = w1p.shape[1]
    Op = w2p.shape[1]
    O = b2.shape[1]

    if B <= block_batch:
        # Latency path: no grid, whole operands resident in VMEM.
        Bp = _round_up(B, 8)
        xp = x if Bp == B else jnp.zeros((Bp, K), x.dtype).at[:B].set(x)
        vmem = pl.BlockSpec(memory_space=pltpu.MemorySpace.VMEM)
        out = pl.pallas_call(
            _mlp_kernel,
            out_shape=jax.ShapeDtypeStruct((Bp, O), jnp.float32),
            in_specs=[vmem, vmem, vmem, vmem, vmem],
            out_specs=vmem,
        )(xp, w1p, b1p, w2p, b2)
    else:
        # Throughput path: tile the batch, keep (tiny) weights VMEM-resident
        # via constant index_map, batch axis "parallel".
        # TODO(synk): profile on v7x to confirm the batch grid actually shards
        # across both TensorCores; if not, add an explicit leading core axis.
        Bp = _round_up(B, block_batch)
        xp = x if Bp == B else jnp.zeros((Bp, K), x.dtype).at[:B].set(x)
        grid = (Bp // block_batch,)
        out = pl.pallas_call(
            _mlp_kernel,
            out_shape=jax.ShapeDtypeStruct((Bp, O), jnp.float32),
            grid=grid,
            in_specs=[
                pl.BlockSpec((block_batch, K), lambda i: (i, 0)),
                pl.BlockSpec((K, Hp), lambda i: (0, 0)),
                pl.BlockSpec((1, Hp), lambda i: (0, 0)),
                pl.BlockSpec((Hp, Op), lambda i: (0, 0)),
                pl.BlockSpec((1, O), lambda i: (0, 0)),
            ],
            out_specs=pl.BlockSpec((block_batch, O), lambda i: (i, 0)),
            compiler_params=pltpu.CompilerParams(
                dimension_semantics=("parallel",),
                vmem_limit_bytes=32 * 1024 * 1024,
            ),
        )(xp, w1p, b1p, w2p, b2)

    return out if Bp == B else out[:B]


def init_params(key, input_dim=2, hidden=100, output_dim=4):
    """Deterministic init mimicking PyTorch nn.Linear default:
    U(-1/sqrt(fan_in), 1/sqrt(fan_in)) for weight and bias.
    Weights stored as [in, out] (transposed vs PyTorch's [out, in])."""
    k1, k2, k3, k4 = jax.random.split(key, 4)
    bound1 = 1.0 / jnp.sqrt(jnp.float32(input_dim))
    bound2 = 1.0 / jnp.sqrt(jnp.float32(hidden))
    w1 = jax.random.uniform(k1, (input_dim, hidden), jnp.float32, -bound1, bound1)
    b1 = jax.random.uniform(k2, (1, hidden), jnp.float32, -bound1, bound1)
    w2 = jax.random.uniform(k3, (hidden, output_dim), jnp.float32, -bound2, bound2)
    b2 = jax.random.uniform(k4, (1, output_dim), jnp.float32, -bound2, bound2)
    return w1, b1, w2, b2


def reference_forward(x, w1, b1, w2, b2):
    h = jnp.maximum(x @ w1 + b1, 0.0)
    return h @ w2 + b2


if __name__ == "__main__":
    key = jax.random.PRNGKey(0)
    k_params, k_x1, k_x2 = jax.random.split(key, 3)

    input_dim, hidden, output_dim = 2, 100, 4
    w1, b1, w2, b2 = init_params(k_params, input_dim, hidden, output_dim)

    # One-time parameter preparation (padding hoisted out of the forward call).
    params_f32 = prepare_params(w1, b1, w2, b2, use_bf16_matmul=False)
    params_bf16 = prepare_params(w1, b1, w2, b2, use_bf16_matmul=True)

    # Small batch -> latency path (no grid, whole-array VMEM refs), exact f32.
    x_small = jax.random.normal(k_x1, (8, input_dim), jnp.float32)
    out_small = jax.block_until_ready(network_forward(x_small, params_f32))
    ref_small = reference_forward(x_small, w1, b1, w2, b2)
    assert out_small.shape == (8, output_dim)
    assert jnp.allclose(out_small, ref_small, atol=1e-4, rtol=1e-4)

    # Larger (non-multiple) batch -> batch-tiled grid path, exact f32.
    x_big = jax.random.normal(k_x2, (300, input_dim), jnp.float32)
    ref_big = reference_forward(x_big, w1, b1, w2, b2)
    out_big_f32 = jax.block_until_ready(
        network_forward(x_big, params_f32, block_batch=128))
    assert out_big_f32.shape == (300, output_dim)
    assert jnp.allclose(out_big_f32, ref_big, atol=1e-4, rtol=1e-4)

    # Same grid path with the bf16 layer-2 MXU matmul (looser tolerance).
    out_big_bf16 = jax.block_until_ready(
        network_forward(x_big, params_bf16, block_batch=128))
    assert out_big_bf16.shape == (300, output_dim)
    assert jnp.allclose(out_big_bf16, ref_big, atol=2e-2, rtol=2e-2)

    print("KERNEL_OK")
</pallas_src>

<mosaic_0001>
module attributes {stable_mosaic.version = 11 : i64} {
  func.func @_mlp_kernel(%arg0: memref<8x2xf32, #tpu.memory_space<vmem>>, %arg1: memref<2x128xf32, #tpu.memory_space<vmem>>, %arg2: memref<1x128xf32, #tpu.memory_space<vmem>>, %arg3: memref<128x128xf32, #tpu.memory_space<vmem>>, %arg4: memref<1x4xf32, #tpu.memory_space<vmem>>, %arg5: memref<8x4xf32, #tpu.memory_space<vmem>>) attributes {dimension_semantics = [], scalar_prefetch = 0 : i64, scratch_operands = 0 : i64, tpu.core_type = #tpu.core_type<tc>} {
    %c0 = arith.constant 0 : index
    %c0_0 = arith.constant 0 : index
    %0 = vector.load %arg2[%c0, %c0_0] : memref<1x128xf32, #tpu.memory_space<vmem>>, vector<1x128xf32>
    %1 = vector.shape_cast %0 : vector<1x128xf32> to vector<1x128xf32>
    %2 = vector.broadcast %1 : vector<1x128xf32> to vector<8x128xf32>
    %c0_1 = arith.constant 0 : index
    %c0_2 = arith.constant 0 : index
    %3 = vector.load %arg0[%c0_1, %c0_2] : memref<8x2xf32, #tpu.memory_space<vmem>>, vector<8x1xf32>
    %c0_3 = arith.constant 0 : index
    %c0_4 = arith.constant 0 : index
    %4 = vector.load %arg1[%c0_3, %c0_4] : memref<2x128xf32, #tpu.memory_space<vmem>>, vector<1x128xf32>
    %5 = vector.broadcast %3 : vector<8x1xf32> to vector<8x128xf32>
    %6 = vector.broadcast %4 : vector<1x128xf32> to vector<8x128xf32>
    %7 = arith.mulf %5, %6 : vector<8x128xf32>
    %8 = arith.addf %2, %7 : vector<8x128xf32>
    %c0_5 = arith.constant 0 : index
    %c1 = arith.constant 1 : index
    %9 = vector.load %arg0[%c0_5, %c1] : memref<8x2xf32, #tpu.memory_space<vmem>>, vector<8x1xf32>
    %c1_6 = arith.constant 1 : index
    %c0_7 = arith.constant 0 : index
    %10 = vector.load %arg1[%c1_6, %c0_7] : memref<2x128xf32, #tpu.memory_space<vmem>>, vector<1x128xf32>
    %11 = vector.broadcast %9 : vector<8x1xf32> to vector<8x128xf32>
    %12 = vector.broadcast %10 : vector<1x128xf32> to vector<8x128xf32>
    %13 = arith.mulf %11, %12 : vector<8x128xf32>
    %14 = arith.addf %8, %13 : vector<8x128xf32>
    %cst = arith.constant 0.000000e+00 : f32
    %15 = vector.broadcast %cst : f32 to vector<8x128xf32>
    %16 = arith.maximumf %14, %15 : vector<8x128xf32>
    %c0_8 = arith.constant 0 : index
    %c0_9 = arith.constant 0 : index
    %17 = vector.load %arg3[%c0_8, %c0_9] : memref<128x128xf32, #tpu.memory_space<vmem>>, vector<128x128xf32>
    %cst_10 = arith.constant dense<0.000000e+00> : vector<8x128xf32>
    %18 = tpu.matmul %16, %17, %cst_10 {dimension_numbers = #tpu.dot_dimension_numbers<[1], [0], [0], [1], [0, 0, 1, 1], [], []>} : vector<8x128xf32>, vector<128x128xf32>, vector<8x128xf32> -> vector<8x128xf32>
    %19 = vector.extract_strided_slice %18 {offsets = [0, 0], sizes = [8, 4], strides = [1, 1]} : vector<8x128xf32> to vector<8x4xf32>
    %c0_11 = arith.constant 0 : index
    %c0_12 = arith.constant 0 : index
    %20 = vector.load %arg4[%c0_11, %c0_12] : memref<1x4xf32, #tpu.memory_space<vmem>>, vector<1x4xf32>
    %21 = vector.broadcast %20 : vector<1x4xf32> to vector<8x4xf32>
    %22 = arith.addf %19, %21 : vector<8x4xf32>
    %c0_13 = arith.constant 0 : index
    %c0_14 = arith.constant 0 : index
    %23 = vector.load %arg5[%c0_13, %c0_14] : memref<8x4xf32, #tpu.memory_space<vmem>>, vector<8x4xf32>
    tpu.vector_store %arg5[%c0_13, %c0_14], %22 {strides = array<i32>} : memref<8x4xf32, #tpu.memory_space<vmem>>, vector<8x4xf32>,
    return
  }
}

</mosaic_0001>

<llo_original>
// kernel: tpu_custom_call.1
$region0: #{tpu_custom_call.1}
  #allocation0 [shape = 'u32[]', space=smem, size = 0x4, offset = 0x4, fixed_abs, tag = 'smem constant byte address 0x4 - core index']
  #allocation1 [shape = 'u32[72,128]{1,0:T(1,128)}', space=vmem, size = 0x9000, scoped, tag = 'internal scratch']
  %s0 = inlined_call_operand.vmem [shape: f32[8,2], index: 0, kind: input, shape index: {}]
  %s1 = inlined_call_operand.vmem [shape: f32[2,128], index: 1, kind: input, shape index: {}]
  %s2 = inlined_call_operand.vmem [shape: f32[1,128], index: 2, kind: input, shape index: {}]
  %s3 = inlined_call_operand.hbm [shape: f32[128,128], index: 3, kind: input, shape index: {}]
  %s4 = inlined_call_operand.vmem [shape: f32[1,4], index: 4, kind: input, shape index: {}]
  %s5 = inlined_call_operand.vmem [shape: f32[8,4], index: 5, kind: output, shape index: {}]
  %s6 = sld [smem:[#allocation0]]
  $region34: #{tpu_custom_call.1} parent=0
    _
  %s8 = ssub.s32 1, %s6
  %s9 = scalar_select 0, %s8, %s6
  $region1: #{tpu_custom_call.1} parent=0
    #allocation2 [shape = 'u8[65536]{0}', space=vmem, size = 0x10000, scoped, tag = 'input window, operand 3, single buffered']
    #allocation3 [shape = 's32[1]{0}', space=sflag, size = 0x4, scoped, tag = 'scoped memory for tpu_custom_call.1']
    %10 = vsyncpa [#allocation3], 0
    // Predicated region
    $region2: #{tpu_custom_call.1} parent=1 // pred_check
      _
    $region3: #{tpu_custom_call.1} parent=1 // pred_check_branch
      %12 = sbr.rel (0) target = $region5
    $region4: #{tpu_custom_call.1} parent=1 // pred_region
      _
    $region5: #{tpu_custom_call.1} parent=1 // pred_fallthru
      _
    // Predicated region
    $region6: #{tpu_custom_call.1} parent=1 // pred_check
      _
    $region7: #{tpu_custom_call.1} parent=1 // pred_check_branch
      %14 = sbr.rel (0) target = $region9
    $region8: #{tpu_custom_call.1} parent=1 // pred_region
      _
    $region9: #{tpu_custom_call.1} parent=1 // pred_fallthru
      _
    // Predicated region
    $region10: #{tpu_custom_call.1} parent=1 // pred_check
      _
    $region11: #{tpu_custom_call.1} parent=1 // pred_check_branch
      %16 = sbr.rel (0) target = $region13
    $region12: #{tpu_custom_call.1} parent=1 // pred_region
      _
    $region13: #{tpu_custom_call.1} parent=1 // pred_fallthru
      _
    // Predicated region
    $region14: #{tpu_custom_call.1} parent=1 // pred_check
      _
    $region15: #{tpu_custom_call.1} parent=1 // pred_check_branch
      %18 = sbr.rel (0) target = $region17
    $region16: #{tpu_custom_call.1} parent=1 // pred_region
      %20 = vsyncadd [#allocation3], 0
      %s21 = sshll.u32 %s3, 4
      %s22 = int_to_ptr.hbm [resolvable:$true] %s21
      %s23 = sshll.u32 [#allocation2], 4
      %s24 = int_to_ptr.vmem [resolvable:$true] %s23
      %29 = dma.hbm_to_vmem [thread:$0]  %s22, 2048, %s24, [#allocation3], 128, 128, 8
    $region17: #{tpu_custom_call.1} parent=1 // pred_fallthru
      _
    // Predicated region
    $region18: #{tpu_custom_call.1} parent=1 // pred_check
      _
    $region19: #{tpu_custom_call.1} parent=1 // pred_check_branch
      %31 = sbr.rel (0) target = $region21
    $region20: #{tpu_custom_call.1} parent=1 // pred_region
      _
    $region21: #{tpu_custom_call.1} parent=1 // pred_fallthru
      _
    // Predicated region
    $region22: #{tpu_custom_call.1} parent=1 // pred_check
      _
    $region23: #{tpu_custom_call.1} parent=1 // pred_check_branch
      %33 = sbr.rel (0) target = $region25
    $region24: #{tpu_custom_call.1} parent=1 // pred_region
      %35 = dma.done [#allocation3], 2048
    $region25: #{tpu_custom_call.1} parent=1 // pred_fallthru
      _
    %v36 = vld [vmem:[%s2] sm:$0x1]
    %v38 = vperm.slane %v36, 0
    %v40 = vld [vmem:[%s0] sm:$0xff]
    %v41 = vld [vmem:[%s1] sm:$0x1]
    %43 = vset.pattern.permute.xlu0 0
    %44 = vperm.xlu0 %43, %v40
    %v45 = vpop.permute.xlu0 %44
    %v47 = vperm.slane %v41, 0
    %v48 = vmul.f32 %v45, %v47
    %v49 = vadd.f32 %v38, %v48
    %v50 = vld [vmem:[%s1 + $0x1] sm:$0x1]
    %51 = vset.pattern.permute.xlu0 1
    %52 = vperm.xlu0 %51, %v40
    %v53 = vpop.permute.xlu0 %52
    %v55 = vperm.slane %v50, 0
    %v56 = vmul.f32 %v53, %v55
    %v57 = vadd.f32 %v49, %v56
    %v58 = vmax.f32 %v57, 0.0
    %v59 = vld [vmem:[#allocation2] sm:$0xff]
    %v60 = vld [vmem:[#allocation2 + $0x8] sm:$0xff]
    %v61 = vld [vmem:[#allocation2 + $0x10] sm:$0xff]
    %v62 = vld [vmem:[#allocation2 + $0x18] sm:$0xff]
    %v63 = vld [vmem:[#allocation2 + $0x20] sm:$0xff]
    %v64 = vld [vmem:[#allocation2 + $0x28] sm:$0xff]
    %v65 = vld [vmem:[#allocation2 + $0x30] sm:$0xff]
    %v66 = vld [vmem:[#allocation2 + $0x38] sm:$0xff]
    %v67 = vld [vmem:[#allocation2 + $0x40] sm:$0xff]
    %v68 = vld [vmem:[#allocation2 + $0x48] sm:$0xff]
    %v69 = vld [vmem:[#allocation2 + $0x50] sm:$0xff]
    %v70 = vld [vmem:[#allocation2 + $0x58] sm:$0xff]
    %v71 = vld [vmem:[#allocation2 + $0x60] sm:$0xff]
    %v72 = vld [vmem:[#allocation2 + $0x68] sm:$0xff]
    %v73 = vld [vmem:[#allocation2 + $0x70] sm:$0xff]
    %v74 = vld [vmem:[#allocation2 + $0x78] sm:$0xff]
    %75 = vmatpush.msra.mxu0 %v74
    %76 = vmatpush.msra.mxu0 %v73
    %77 = vmatpush.msra.mxu0 %v72
    %78 = vmatpush.msra.mxu0 %v71
    %79 = vmatpush.msra.mxu0 %v70
    %80 = vmatpush.msra.mxu0 %v69
    %81 = vmatpush.msra.mxu0 %v68
    %82 = vmatpush.msra.mxu0 %v67
    %83 = vmatpush.msra.mxu0 %v66
    %84 = vmatpush.msra.mxu0 %v65
    %85 = vmatpush.msra.mxu0 %v64
    %86 = vmatpush.msra.mxu0 %v63
    %87 = vmatpush.msra.mxu0 %v62
    %88 = vmatpush.msra.mxu0 %v61
    %89 = vmatpush.msra.mxu0 %v60
    %90 = vmatpush.msra.mxu0 %v59
    %91 = vmatmul.f32.gmra.mxu0 %v58
    %v92 = vpop.f32.mrf.mxu0
    %v93 = vadd.f32 0.0, %v92
    %94 = vdwg.mxu0
    %v95 = vld [vmem:[%s4] sm:$0x1]
    %v97 = vperm.slane %v95, 0
    %v99 = vadd.f32 %v93, %v97
    %vm100 = vcmask 31744
    %101 = vst.msk [vmem:[%s5] sm:$0xff] %vm100, %v99
    // Predicated region
    $region26: #{tpu_custom_call.1} parent=1 // pred_check
      _
    $region27: #{tpu_custom_call.1} parent=1 // pred_check_branch
      %103 = sbr.rel (0) target = $region29
    $region28: #{tpu_custom_call.1} parent=1 // pred_region
      _
    $region29: #{tpu_custom_call.1} parent=1 // pred_fallthru
      _
    // Predicated region
    $region30: #{tpu_custom_call.1} parent=1 // pred_check
      _
    $region31: #{tpu_custom_call.1} parent=1 // pred_check_branch
      %105 = sbr.rel (0) target = $region33
    $region32: #{tpu_custom_call.1} parent=1 // pred_region
      _
    $region33: #{tpu_custom_call.1} parent=1 // pred_fallthru
      _
    %106 = vsyncpa [#allocation3], 1

</llo_original>
